<compile_context>
chip_gen: v7x
topology: tpu7x:2x2x1
jax: 0.10.0
libtpu: 0.0.40
codegen_flags: <defaults>
</compile_context>

<pallas_src>
import functools

import jax
import jax.numpy as jnp
from jax.experimental import pallas as pl
from jax.experimental.pallas import tpu as pltpu


# Tile sizing budgets (conservative across v5e / v6e / v7x):
#  - keep 2 buffers x (input tile + output tile) under ~24 MiB so the pipeline
#    double-buffers comfortably even on v7x's 64 MiB-per-TC VMEM,
#  - raise the scoped VMEM limit to 32 MiB so v5e's 16 MiB default doesn't
#    shrink large tiles (32 MiB is the default on v6e/v7x and well under
#    v7x's 64 MiB physical).
_TILE_VMEM_BUDGET = 24 * 1024 * 1024
_VMEM_LIMIT_BYTES = 32 * 1024 * 1024


def _round_down8(n: int) -> int:
    return max(8, (n // 8) * 8)


def _auto_block_rows(bsz: int, hidden: int, itemsize: int) -> int:
    """Largest row tile (multiple of 8) that fits the double-buffered VMEM budget,
    capped so large batches get several grid steps (DMA/compute overlap and
    v7x megacore sharding of the row axis)."""
    if bsz <= 8:
        return bsz
    # 2 buffers each for the input tile and the output tile.
    bytes_per_row = 2 * 2 * hidden * itemsize
    fit = max(8, _TILE_VMEM_BUDGET // max(1, bytes_per_row))
    br = min(bsz, 1024, fit)
    # Aim for >= ~4 grid steps when the batch is large enough.
    if bsz >= 4 * 256:
        br = min(br, _round_down8(pl.cdiv(bsz, 4)))
    br = _round_down8(br)
    return bsz if br >= bsz else br


def _layernorm_kernel(x_ref, gamma_ref, beta_ref, o_ref, *, epsilon, inv_h):
    # x_ref: (TB, H) tile in VMEM; gamma/beta: (1, H) f32.
    x = x_ref[...].astype(jnp.float32)

    # Fused single-pass statistics: one trip over the tile feeds both
    # lane-axis reductions (sum and sum-of-squares).
    s = jnp.sum(x, axis=-1, keepdims=True)
    sq = jnp.sum(x * x, axis=-1, keepdims=True)
    mean = s * inv_h
    # Biased variance via E[x^2] - mean^2, clamped at 0 against cancellation.
    var = jnp.maximum(sq * inv_h - mean * mean, 0.0)
    inv_std = jax.lax.rsqrt(var + epsilon)

    y = beta_ref[...] + gamma_ref[...] * ((x - mean) * inv_std)
    o_ref[...] = y.astype(o_ref.dtype)


def my_layer_norm(x, gamma, beta, epsilon=1e-5, *, block_rows=None):
    """Pallas TPU layer-norm matching myLayerNorm.forward semantics.

    x: (bsz, hidden). gamma/beta: (hidden,).
    Output dtype matches x (so bf16 inputs keep a bf16 store path on v6e/v7x);
    statistics are always accumulated in f32.

    Note: stores are lane-dense only when hidden is a multiple of 128; smaller
    hidden (like the 32-wide test case) lowers to masked partial stores.
    """
    bsz, hidden = x.shape
    itemsize = jnp.dtype(x.dtype).itemsize

    if block_rows is None:
        block_rows = _auto_block_rows(bsz, hidden, itemsize)
    elif block_rows != bsz:
        # Mosaic requires the second-to-last block dim to be a multiple of 8
        # or equal to the full array extent.
        block_rows = _round_down8(min(block_rows, bsz))
        if block_rows >= bsz:
            block_rows = bsz

    # Present gamma/beta as (1, hidden) lane-major 2D tiles in f32.
    gamma2 = gamma.reshape(1, hidden).astype(jnp.float32)
    beta2 = beta.reshape(1, hidden).astype(jnp.float32)

    grid = (pl.cdiv(bsz, block_rows),)
    kernel = functools.partial(
        _layernorm_kernel, epsilon=float(epsilon), inv_h=float(1.0 / hidden)
    )

    return pl.pallas_call(
        kernel,
        out_shape=jax.ShapeDtypeStruct((bsz, hidden), x.dtype),
        grid_spec=pltpu.PrefetchScalarGridSpec(
            num_scalar_prefetch=0,
            grid=grid,
            in_specs=[
                pl.BlockSpec((block_rows, hidden), lambda i: (i, 0)),
                pl.BlockSpec((1, hidden), lambda i: (0, 0)),
                pl.BlockSpec((1, hidden), lambda i: (0, 0)),
            ],
            out_specs=pl.BlockSpec((block_rows, hidden), lambda i: (i, 0)),
        ),
        compiler_params=pltpu.CompilerParams(
            dimension_semantics=("parallel",),
            vmem_limit_bytes=_VMEM_LIMIT_BYTES,
        ),
    )(x, gamma2, beta2)


if __name__ == "__main__":
    def reference(x, gamma, beta, eps):
        mean = jnp.mean(x, axis=1, keepdims=True)
        var = jnp.mean((x - mean) ** 2, axis=1, keepdims=True)
        return beta.reshape(1, -1) + gamma.reshape(1, -1) * (
            (x - mean) / jnp.sqrt(eps + var)
        )

    # Small shape matching the module's forward signature (bsz, hidden).
    key = jax.random.PRNGKey(0)
    bsz, hidden = 8, 32
    x = jax.random.normal(key, (bsz, hidden), dtype=jnp.float32)
    # Deterministic param init matching nn.Parameter(torch.zeros/ones(hidden_dim)).
    beta = jnp.zeros((hidden,), dtype=jnp.float32)
    gamma = jnp.ones((hidden,), dtype=jnp.float32)

    out = jax.block_until_ready(my_layer_norm(x, gamma, beta, epsilon=1e-5))
    ref = reference(x, gamma, beta, 1e-5)
    assert jnp.allclose(out, ref, atol=1e-5, rtol=1e-5), "mismatch vs reference (small)"

    # Exercise the tiled path: multi-step grid + non-divisible last tile.
    bsz2, hidden2 = 100, 128
    x2 = jax.random.normal(jax.random.PRNGKey(0), (bsz2, hidden2), dtype=jnp.float32)
    g2 = 1.0 + 0.1 * jax.random.normal(jax.random.PRNGKey(1), (hidden2,), dtype=jnp.float32)
    b2 = 0.1 * jax.random.normal(jax.random.PRNGKey(2), (hidden2,), dtype=jnp.float32)
    out2 = jax.block_until_ready(my_layer_norm(x2, g2, b2, epsilon=1e-5))
    ref2 = reference(x2, g2, b2, 1e-5)
    assert jnp.allclose(out2, ref2, atol=1e-4, rtol=1e-4), "mismatch vs reference (tiled)"

    print("KERNEL_OK")
</pallas_src>

<mosaic_0001>
module attributes {stable_mosaic.version = 11 : i64} {
  func.func @_layernorm_kernel(%arg0: i32, %arg1: memref<8x32xf32, #tpu.memory_space<vmem>>, %arg2: memref<1x32xf32, #tpu.memory_space<vmem>>, %arg3: memref<1x32xf32, #tpu.memory_space<vmem>>, %arg4: memref<8x32xf32, #tpu.memory_space<vmem>>) attributes {dimension_semantics = [#tpu.dimension_semantics<parallel>], iteration_bounds = array<i64: 1>, scalar_prefetch = 0 : i64, scratch_operands = 0 : i64, tpu.core_type = #tpu.core_type<tc>, window_params = [{transform_indices = @transform_0, window_bounds = array<i64: 8, 32>}, {pipeline_mode = #tpu.pipeline_mode<synchronous>, transform_indices = @transform_1, window_bounds = array<i64: 1, 32>}, {pipeline_mode = #tpu.pipeline_mode<synchronous>, transform_indices = @transform_2, window_bounds = array<i64: 1, 32>}, {transform_indices = @transform_3, window_bounds = array<i64: 8, 32>}]} {
    %c0 = arith.constant 0 : index
    %c0_0 = arith.constant 0 : index
    %0 = vector.load %arg1[%c0, %c0_0] : memref<8x32xf32, #tpu.memory_space<vmem>>, vector<8x32xf32>
    %cst = arith.constant dense<0.000000e+00> : vector<8xf32>
    %1 = vector.multi_reduction <add>, %0, %cst [1] : vector<8x32xf32> to vector<8xf32>
    %2 = vector.shape_cast %1 : vector<8xf32> to vector<8x1xf32>
    %3 = arith.mulf %0, %0 : vector<8x32xf32>
    %cst_1 = arith.constant dense<0.000000e+00> : vector<8xf32>
    %4 = vector.multi_reduction <add>, %3, %cst_1 [1] : vector<8x32xf32> to vector<8xf32>
    %5 = vector.shape_cast %4 : vector<8xf32> to vector<8x1xf32>
    %cst_2 = arith.constant 3.125000e-02 : f32
    %6 = vector.broadcast %cst_2 : f32 to vector<8x1xf32>
    %7 = arith.mulf %2, %6 : vector<8x1xf32>
    %cst_3 = arith.constant 3.125000e-02 : f32
    %8 = vector.broadcast %cst_3 : f32 to vector<8x1xf32>
    %9 = arith.mulf %5, %8 : vector<8x1xf32>
    %10 = arith.mulf %7, %7 : vector<8x1xf32>
    %11 = arith.subf %9, %10 : vector<8x1xf32>
    %cst_4 = arith.constant 0.000000e+00 : f32
    %12 = vector.broadcast %cst_4 : f32 to vector<8x1xf32>
    %13 = arith.maximumf %11, %12 : vector<8x1xf32>
    %cst_5 = arith.constant 9.99999974E-6 : f32
    %14 = vector.broadcast %cst_5 : f32 to vector<8x1xf32>
    %15 = arith.addf %13, %14 : vector<8x1xf32>
    %16 = math.rsqrt %15 : vector<8x1xf32>
    %c0_6 = arith.constant 0 : index
    %c0_7 = arith.constant 0 : index
    %17 = vector.load %arg3[%c0_6, %c0_7] : memref<1x32xf32, #tpu.memory_space<vmem>>, vector<1x32xf32>
    %c0_8 = arith.constant 0 : index
    %c0_9 = arith.constant 0 : index
    %18 = vector.load %arg2[%c0_8, %c0_9] : memref<1x32xf32, #tpu.memory_space<vmem>>, vector<1x32xf32>
    %19 = vector.broadcast %7 : vector<8x1xf32> to vector<8x32xf32>
    %20 = arith.subf %0, %19 : vector<8x32xf32>
    %21 = vector.broadcast %16 : vector<8x1xf32> to vector<8x32xf32>
    %22 = arith.mulf %20, %21 : vector<8x32xf32>
    %23 = vector.broadcast %18 : vector<1x32xf32> to vector<8x32xf32>
    %24 = arith.mulf %23, %22 : vector<8x32xf32>
    %25 = vector.broadcast %17 : vector<1x32xf32> to vector<8x32xf32>
    %26 = arith.addf %25, %24 : vector<8x32xf32>
    %c0_10 = arith.constant 0 : index
    %c0_11 = arith.constant 0 : index
    %27 = vector.load %arg4[%c0_10, %c0_11] : memref<8x32xf32, #tpu.memory_space<vmem>>, vector<8x32xf32>
    tpu.vector_store %arg4[%c0_10, %c0_11], %26 {strides = array<i32>} : memref<8x32xf32, #tpu.memory_space<vmem>>, vector<8x32xf32>,
    return
  }
  func.func @transform_0(%arg0: i32) -> (i32, i32) {
    %c0_i32 = arith.constant 0 : i32
    %c0_i32_0 = arith.constant 0 : i32
    return %arg0, %c0_i32 : i32, i32
  }
  func.func @transform_1(%arg0: i32) -> (i32, i32) {
    %c0_i32 = arith.constant 0 : i32
    %c0_i32_0 = arith.constant 0 : i32
    %c0_i32_1 = arith.constant 0 : i32
    return %c0_i32, %c0_i32_0 : i32, i32
  }
  func.func @transform_2(%arg0: i32) -> (i32, i32) {
    %c0_i32 = arith.constant 0 : i32
    %c0_i32_0 = arith.constant 0 : i32
    %c0_i32_1 = arith.constant 0 : i32
    return %c0_i32, %c0_i32_0 : i32, i32
  }
  func.func @transform_3(%arg0: i32) -> (i32, i32) {
    %c0_i32 = arith.constant 0 : i32
    %c0_i32_0 = arith.constant 0 : i32
    return %arg0, %c0_i32 : i32, i32
  }
}

</mosaic_0001>

<llo_original>
// kernel: tpu_custom_call.1
$region0: #{tpu_custom_call.1}
  #allocation0 [shape = 'u32[]', space=smem, size = 0x4, offset = 0x4, fixed_abs, tag = 'smem constant byte address 0x4 - core index']
  #allocation1 [shape = 'u32[144,128]{1,0:T(1,128)}', space=vmem, size = 0x12000, scoped, tag = 'internal scratch']
  %s0 = inlined_call_operand.hbm [shape: f32[8,32], index: 0, kind: input, shape index: {}]
  %s1 = inlined_call_operand.vmem [shape: f32[1,32], index: 1, kind: input, shape index: {}]
  %s2 = inlined_call_operand.vmem [shape: f32[1,32], index: 2, kind: input, shape index: {}]
  %s3 = inlined_call_operand.hbm [shape: f32[8,32], index: 3, kind: output, shape index: {}]
  %s4 = sld [smem:[#allocation0]]
  $region26: #{tpu_custom_call.1} parent=0
    _
  %s6 = ssub.s32 1, %s4
  %s7 = scalar_select 0, %s6, %s4
  $region1: #{tpu_custom_call.1} parent=0
    #allocation2 [shape = 'u8[4096]{0}', space=vmem, size = 0x1000, scoped, tag = 'input window, operand 0, single buffered']
    #allocation3 [shape = 's32[1]{0}', space=sflag, size = 0x4, scoped, tag = 'scoped memory for tpu_custom_call.1']
    #allocation4 [shape = 's32[1]{0}', space=sflag, size = 0x4, scoped, tag = 'scoped memory for tpu_custom_call.1']
    #allocation5 [shape = 'u8[4096]{0}', space=vmem, size = 0x1000, scoped, tag = 'output window, operand 0, single buffered']
    %8 = vsyncpa [#allocation3], 0
    %9 = vsyncpa [#allocation4], 0
    // Predicated region
    $region2: #{tpu_custom_call.1} parent=1 // pred_check
      _
    $region3: #{tpu_custom_call.1} parent=1 // pred_check_branch
      %11 = sbr.rel (0) target = $region5
    $region4: #{tpu_custom_call.1} parent=1 // pred_region
      %s13 = ssub.s32 128, 128
      %14 = vsyncadd [#allocation3], %s13
      %s16 = sshll.u32 [#allocation2], 4
      %s17 = int_to_ptr.vmem [resolvable:$true] %s16
      %19 = dma.hbm_to_vmem [thread:$0]  %s0, 128, %s17, [#allocation3]
    $region5: #{tpu_custom_call.1} parent=1 // pred_fallthru
      _
    // Predicated region
    $region6: #{tpu_custom_call.1} parent=1 // pred_check
      _
    $region7: #{tpu_custom_call.1} parent=1 // pred_check_branch
      %21 = sbr.rel (0) target = $region9
    $region8: #{tpu_custom_call.1} parent=1 // pred_region
      _
    $region9: #{tpu_custom_call.1} parent=1 // pred_fallthru
      _
    // Predicated region
    $region10: #{tpu_custom_call.1} parent=1 // pred_check
      _
    $region11: #{tpu_custom_call.1} parent=1 // pred_check_branch
      %23 = sbr.rel (0) target = $region13
    $region12: #{tpu_custom_call.1} parent=1 // pred_region
      _
    $region13: #{tpu_custom_call.1} parent=1 // pred_fallthru
      _
    // Predicated region
    $region14: #{tpu_custom_call.1} parent=1 // pred_check
      _
    $region15: #{tpu_custom_call.1} parent=1 // pred_check_branch
      %25 = sbr.rel (0) target = $region17
    $region16: #{tpu_custom_call.1} parent=1 // pred_region
      %26 = dma.done [#allocation3], 128
    $region17: #{tpu_custom_call.1} parent=1 // pred_fallthru
      _
    %v27 = vld [vmem:[#allocation2] sm:$0xff]
    %vm28 = vcmask 261120
    %v29 = vsel %vm28, %v27, 0.0
    %30 = vadd.xlane.f32.xlu0 %v29
    %v31 = vpop.xlane.xlu0 %30
    %v32 = vmul.f32 %v27, %v27
    %v33 = vsel %vm28, %v32, 0.0
    %34 = vadd.xlane.f32.xlu0 %v33
    %v35 = vpop.xlane.xlu0 %34
    %v36 = vmul.f32 %v31, 0.03125
    %v37 = vmul.f32 %v35, 0.03125
    %v38 = vmul.f32 %v36, %v36
    %v39 = vsub.f32 %v37, %v38
    %v40 = vmax.f32 %v39, 0.0
    %v41 = vadd.f32 %v40, 1e-05
    %v42 = vrsqrt.pop %v41
    %v43 = vld [vmem:[%s2] sm:$0x1]
    %v44 = vld [vmem:[%s1] sm:$0x1]
    %v45 = vsub.f32 %v27, %v36
    %v46 = vmul.f32 %v45, %v42
    %v48 = vlaneseq
    %v49 = vshrl.u32 %v48, 7
    %v50 = vsub.s32 0, %v49
    %v51 = vrot.slane %v44, %v50
    %v53 = vmul.f32 %v51, %v46
    %v55 = vlaneseq
    %v56 = vshrl.u32 %v55, 7
    %v57 = vsub.s32 0, %v56
    %v58 = vrot.slane %v43, %v57
    %v60 = vadd.f32 %v58, %v53
    %61 = vst.msk [vmem:[#allocation5] sm:$0xff] %vm28, %v60
    // Predicated region
    $region18: #{tpu_custom_call.1} parent=1 // pred_check
      _
    $region19: #{tpu_custom_call.1} parent=1 // pred_check_branch
      %63 = sbr.rel (0) target = $region21
    $region20: #{tpu_custom_call.1} parent=1 // pred_region
      %s65 = ssub.s32 128, 128
      %66 = vsyncadd [#allocation4], %s65
      %s68 = sshll.u32 [#allocation5], 4
      %s69 = int_to_ptr.vmem [resolvable:$true] %s68
      %71 = dma.vmem_to_hbm [thread:$0]  %s69, 128, %s3, [#allocation4]
    $region21: #{tpu_custom_call.1} parent=1 // pred_fallthru
      _
    // Predicated region
    $region22: #{tpu_custom_call.1} parent=1 // pred_check
      _
    $region23: #{tpu_custom_call.1} parent=1 // pred_check_branch
      %73 = sbr.rel (0) target = $region25
    $region24: #{tpu_custom_call.1} parent=1 // pred_region
      %74 = dma.done [#allocation4], 128
    $region25: #{tpu_custom_call.1} parent=1 // pred_fallthru
      _
    %75 = vsyncpa [#allocation3], 1
    %76 = vsyncpa [#allocation4], 1

</llo_original>
